<compile_context>
chip_gen: v6e
topology: v6e:2x2x1
jax: 0.10.0
libtpu: 0.0.40
codegen_flags: <defaults>
</compile_context>

<pallas_src>
import functools

import jax
import jax.numpy as jnp
from jax.experimental import pallas as pl
from jax.experimental.pallas import tpu as pltpu


# ---------------------------------------------------------------------------
# Model hyper-parameters (small, structurally identical to the PyTorch module
# NBeats(block_type='generic', ...)).
# ---------------------------------------------------------------------------
BATCH        = 8
INPUT_LEN    = 32     # input_len
PRED_LEN     = 16     # pred_len
D_MODEL      = 32     # d_model (layer_size)
INNER_LAYERS = 2      # inner_layers (layers per NBeatsBlock)
OUTER_LAYERS = 2      # outer_layers (number of NBeatsBlocks)
INPUT_VARS   = 2      # input_vars (enc_in)
THETA_SIZE   = INPUT_LEN + PRED_LEN

P_PAD        = 128           # lane-padded width of backcast / forecast halves
TILE_M       = 2048          # rows per grid step at scale (sweepable)
SPLIT_MIN    = 256           # above this, force >=2 balanced grid steps (v7x)
COMPUTE_DT   = jnp.bfloat16  # MXU operand dtype (f32 accumulation everywhere)
OUT_DT       = jnp.bfloat16  # kernel output store dtype (halves HBM writeback)


def _round_up(n, m):
    return ((n + m - 1) // m) * m


# ---------------------------------------------------------------------------
# Kernel: full N-Beats stack for one batch tile of the folded [V*B, L] input.
# ---------------------------------------------------------------------------
def _nbeats_kernel(x_ref, *refs, inner_layers, outer_layers, input_len):
    """refs = (w_in, b_in, [w_hid, b_hid,] w_th, b_th, out_ref).

    x_ref : [TM, L]                     (f32)
    w_in  : [outer, P_PAD, D]           (bf16)  first Linear, input zero-padded
    b_in  : [outer, 1, D]               (f32)
    w_hid : [outer*(inner-1), D, D]     (bf16)  remaining inner Linears
    b_hid : [outer*(inner-1), 1, D]     (f32)
    w_th  : [outer, D, 2*P_PAD]         (bf16)  fused [backcast | forecast]
    b_th  : [outer, 1, 2*P_PAD]         (f32)
    out   : [TM, P_PAD]                 (bf16)
    """
    out_ref = refs[-1]
    if inner_layers > 1:
        (w_in, b_in, w_hid, b_hid, w_th, b_th) = refs[:-1]
    else:
        (w_in, b_in, w_th, b_th) = refs[:-1]
        w_hid = b_hid = None

    tm = x_ref.shape[0]
    x = x_ref[...].astype(jnp.float32)                           # [TM, L]
    # Lane-pad the residual slab once in VMEM so both the backcast subtraction
    # and the theta slice are 128-lane tile aligned.  Padding lanes stay 0
    # across blocks (zero weight rows/cols + zero bias in padding).
    residuals = jnp.concatenate(
        [x, jnp.zeros((tm, P_PAD - input_len), jnp.float32)], axis=-1)
    forecast = jnp.zeros((tm, P_PAD), jnp.float32)

    for blk in range(outer_layers):
        # inner MLP: Linear -> relu, repeated (bf16 operands, f32 accumulate)
        h = jnp.maximum(
            jnp.dot(residuals.astype(w_in.dtype), w_in[blk],
                    preferred_element_type=jnp.float32) + b_in[blk], 0.0)
        for l in range(inner_layers - 1):
            j = blk * (inner_layers - 1) + l
            h = jnp.maximum(
                jnp.dot(h.astype(w_hid.dtype), w_hid[j],
                        preferred_element_type=jnp.float32) + b_hid[j], 0.0)

        # Fused theta projection: one N=2*P_PAD matmul per block.
        theta = jnp.dot(h.astype(w_th.dtype), w_th[blk],
                        preferred_element_type=jnp.float32) + b_th[blk]
        residuals = residuals - theta[:, :P_PAD]    # backcast (tile-aligned)
        forecast = forecast + theta[:, P_PAD:]      # forecast (tile-aligned)

    out_ref[...] = forecast.astype(out_ref.dtype)


# ---------------------------------------------------------------------------
# Parameters: PyTorch-style per-layer list (for the reference) + stacked form
# consumed by the kernel.
# ---------------------------------------------------------------------------
def init_params(key):
    """Per block: inner_layers Linears (first: L->D, rest: D->D) + theta
    Linear (D -> L+P).  Weights stored [in, out]; biases [1, out]."""
    params = []
    for _ in range(OUTER_LAYERS):
        in_dim = INPUT_LEN
        for _ in range(INNER_LAYERS):
            key, k1, k2 = jax.random.split(key, 3)
            scale = 1.0 / jnp.sqrt(jnp.float32(in_dim))
            params.append(jax.random.uniform(k1, (in_dim, D_MODEL),
                                             jnp.float32, -scale, scale))
            params.append(jax.random.uniform(k2, (1, D_MODEL),
                                             jnp.float32, -scale, scale))
            in_dim = D_MODEL
        key, k1, k2 = jax.random.split(key, 3)
        scale = 1.0 / jnp.sqrt(jnp.float32(D_MODEL))
        params.append(jax.random.uniform(k1, (D_MODEL, THETA_SIZE),
                                         jnp.float32, -scale, scale))
        params.append(jax.random.uniform(k2, (1, THETA_SIZE),
                                         jnp.float32, -scale, scale))
    return params


def stack_params(params, compute_dtype=COMPUTE_DT):
    """Collapse the per-layer list into a few stacked arrays for the kernel.

    * first-layer weight is zero-padded on its input dim L -> P_PAD so it can
      consume the lane-padded residual slab directly,
    * theta Linear is split into backcast / forecast halves, each half padded
      to P_PAD output lanes, then fused into one [D, 2*P_PAD] weight,
    * weights cast to the MXU operand dtype; biases stay f32."""
    w_in, b_in, w_hid, b_hid, w_th, b_th = [], [], [], [], [], []
    idx = 0
    for _ in range(OUTER_LAYERS):
        w0, b0 = params[idx], params[idx + 1]; idx += 2
        w_in.append(jnp.pad(w0, ((0, P_PAD - INPUT_LEN), (0, 0))))
        b_in.append(b0)
        for _ in range(INNER_LAYERS - 1):
            w_hid.append(params[idx]); b_hid.append(params[idx + 1]); idx += 2
        wt, bt = params[idx], params[idx + 1]; idx += 2
        w_bc = jnp.pad(wt[:, :INPUT_LEN], ((0, 0), (0, P_PAD - INPUT_LEN)))
        w_fc = jnp.pad(wt[:, INPUT_LEN:], ((0, 0), (0, P_PAD - PRED_LEN)))
        b_bc = jnp.pad(bt[:, :INPUT_LEN], ((0, 0), (0, P_PAD - INPUT_LEN)))
        b_fc = jnp.pad(bt[:, INPUT_LEN:], ((0, 0), (0, P_PAD - PRED_LEN)))
        w_th.append(jnp.concatenate([w_bc, w_fc], axis=-1))   # [D, 2*P_PAD]
        b_th.append(jnp.concatenate([b_bc, b_fc], axis=-1))   # [1, 2*P_PAD]

    stacks = [jnp.stack(w_in).astype(compute_dtype),
              jnp.stack(b_in).astype(jnp.float32)]
    if INNER_LAYERS > 1:
        stacks += [jnp.stack(w_hid).astype(compute_dtype),
                   jnp.stack(b_hid).astype(jnp.float32)]
    stacks += [jnp.stack(w_th).astype(compute_dtype),
               jnp.stack(b_th).astype(jnp.float32)]
    return stacks


# ---------------------------------------------------------------------------
# Wrapper
# ---------------------------------------------------------------------------
def nbeats_forward(x_blv, stacks):
    """x_blv: [B, input_len, input_vars]  ->  [B, pred_len, input_vars]."""
    B, L, V = x_blv.shape
    assert L == INPUT_LEN

    # Fold the per-variable loop into the matmul M dimension.
    M = V * B
    x_m = jnp.transpose(x_blv, (2, 0, 1)).reshape(M, L).astype(jnp.float32)
    # TODO(synk): at scale, accept a pre-folded [V*B, L] layout upstream so
    # this transpose (a separate HBM pass outside the kernel) disappears.

    # Batch tiling: one step at demo scale; >=2 balanced "parallel" steps when
    # M is large (keeps both v7x TensorCores busy), capped at TILE_M rows.
    if M <= SPLIT_MIN:
        tm = _round_up(M, 8)
    else:
        tm = min(TILE_M, _round_up(-(-M // 2), 8))
    m_pad = _round_up(M, tm)
    if m_pad != M:
        x_m = jnp.pad(x_m, ((0, m_pad - M), (0, 0)))

    kernel = functools.partial(
        _nbeats_kernel, inner_layers=INNER_LAYERS, outer_layers=OUTER_LAYERS,
        input_len=L)

    in_specs = [pl.BlockSpec((tm, L), lambda i: (i, 0))]
    for s in stacks:   # whole stacked arrays, VMEM-resident, constant block idx
        in_specs.append(pl.BlockSpec(s.shape, lambda i, _n=s.ndim: (0,) * _n))

    flops = 2 * m_pad * OUTER_LAYERS * (
        P_PAD * D_MODEL
        + (INNER_LAYERS - 1) * D_MODEL * D_MODEL
        + D_MODEL * 2 * P_PAD)
    bytes_accessed = (int(x_m.size) * 4
                      + sum(int(s.size) * s.dtype.itemsize for s in stacks)
                      + m_pad * P_PAD * jnp.dtype(OUT_DT).itemsize)

    out = pl.pallas_call(
        kernel,
        out_shape=jax.ShapeDtypeStruct((m_pad, P_PAD), OUT_DT),
        grid=(m_pad // tm,),
        in_specs=in_specs,
        out_specs=pl.BlockSpec((tm, P_PAD), lambda i: (i, 0)),
        compiler_params=pltpu.CompilerParams(
            dimension_semantics=("parallel",)),   # megacore-friendly on v7x
        cost_estimate=pl.CostEstimate(
            flops=int(flops), transcendentals=0,
            bytes_accessed=int(bytes_accessed)),
    )(x_m, *stacks)

    # [V*B, P_PAD] (bf16) -> [B, pred_len, V] (f32, PyTorch stacking convention)
    out = out[:M, :PRED_LEN].reshape(V, B, PRED_LEN).astype(jnp.float32)
    return jnp.transpose(out, (1, 2, 0))


# ---------------------------------------------------------------------------
# References
# ---------------------------------------------------------------------------
def nbeats_reference(x_blv, params):
    """Pure-JAX f32 reference mirroring the PyTorch forward exactly."""
    res_all = []
    for i in range(INPUT_VARS):
        residuals = x_blv[:, :, i].astype(jnp.float32)
        forecast = jnp.zeros((x_blv.shape[0], PRED_LEN), jnp.float32)
        idx = 0
        for _ in range(OUTER_LAYERS):
            h = residuals
            for _ in range(INNER_LAYERS):
                w, b = params[idx], params[idx + 1]; idx += 2
                h = jax.nn.relu(h @ w + b)
            wt, bt = params[idx], params[idx + 1]; idx += 2
            theta = h @ wt + bt
            residuals = residuals - theta[:, :INPUT_LEN]
            forecast = forecast + theta[:, -PRED_LEN:]
        res_all.append(forecast)
    return jnp.stack(res_all, axis=-1)


def nbeats_reference_mixed(x_blv, params, compute_dtype=COMPUTE_DT):
    """Same math with bf16 matmul operands / f32 accumulation (kernel numerics,
    modulo the final bf16 output store)."""
    res_all = []
    for i in range(INPUT_VARS):
        residuals = x_blv[:, :, i].astype(jnp.float32)
        forecast = jnp.zeros((x_blv.shape[0], PRED_LEN), jnp.float32)
        idx = 0
        for _ in range(OUTER_LAYERS):
            h = residuals
            for _ in range(INNER_LAYERS):
                w, b = params[idx], params[idx + 1]; idx += 2
                h = jax.nn.relu(
                    jnp.dot(h.astype(compute_dtype), w.astype(compute_dtype),
                            preferred_element_type=jnp.float32) + b)
            wt, bt = params[idx], params[idx + 1]; idx += 2
            theta = jnp.dot(h.astype(compute_dtype), wt.astype(compute_dtype),
                            preferred_element_type=jnp.float32) + bt
            residuals = residuals - theta[:, :INPUT_LEN]
            forecast = forecast + theta[:, -PRED_LEN:]
        res_all.append(forecast)
    return jnp.stack(res_all, axis=-1)


if __name__ == "__main__":
    key = jax.random.PRNGKey(0)
    kx, kp, kx2 = jax.random.split(key, 3)

    params = init_params(kp)
    stacks = stack_params(params)

    # ------------------------------------------------------------------
    # Demo-scale run (single grid step).
    # ------------------------------------------------------------------
    x = jax.random.normal(kx, (BATCH, INPUT_LEN, INPUT_VARS), jnp.float32)
    out = jax.block_until_ready(nbeats_forward(x, stacks))
    assert out.shape == (BATCH, PRED_LEN, INPUT_VARS)

    # Check against a reference with matching bf16-operand numerics
    # (tolerance includes the bf16 output store rounding).
    ref_mixed = nbeats_reference_mixed(x, params)
    assert jnp.allclose(out, ref_mixed, atol=3e-2, rtol=3e-2), \
        float(jnp.max(jnp.abs(out - ref_mixed)))

    # Loose check against the pure-f32 PyTorch-faithful reference.
    ref_f32 = nbeats_reference(x, params)
    assert jnp.allclose(out, ref_f32, atol=5e-2, rtol=5e-2), \
        float(jnp.max(jnp.abs(out - ref_f32)))

    # ------------------------------------------------------------------
    # Larger batch: exercises the multi-tile "parallel" grid path and the
    # padded-row slice-off (M = 794 -> 2 grid steps of 400 rows, m_pad = 800).
    # ------------------------------------------------------------------
    big_batch = 397
    x_big = jax.random.normal(kx2, (big_batch, INPUT_LEN, INPUT_VARS),
                              jnp.float32)
    out_big = jax.block_until_ready(nbeats_forward(x_big, stacks))
    assert out_big.shape == (big_batch, PRED_LEN, INPUT_VARS)
    ref_big = nbeats_reference_mixed(x_big, params)
    assert jnp.allclose(out_big, ref_big, atol=3e-2, rtol=3e-2), \
        float(jnp.max(jnp.abs(out_big - ref_big)))

    print("KERNEL_OK")
</pallas_src>

<mosaic_0001>
module attributes {stable_mosaic.version = 11 : i64} {
  func.func @_nbeats_kernel(%arg0: i32, %arg1: memref<16x32xf32, #tpu.memory_space<vmem>>, %arg2: memref<2x128x32xbf16, #tpu.memory_space<vmem>>, %arg3: memref<2x1x32xf32, #tpu.memory_space<vmem>>, %arg4: memref<2x32x32xbf16, #tpu.memory_space<vmem>>, %arg5: memref<2x1x32xf32, #tpu.memory_space<vmem>>, %arg6: memref<2x32x256xbf16, #tpu.memory_space<vmem>>, %arg7: memref<2x1x256xf32, #tpu.memory_space<vmem>>, %arg8: memref<16x128xbf16, #tpu.memory_space<vmem>>) attributes {dimension_semantics = [#tpu.dimension_semantics<parallel>], iteration_bounds = array<i64: 1>, scalar_prefetch = 0 : i64, scratch_operands = 0 : i64, tpu.core_type = #tpu.core_type<tc>, window_params = [{transform_indices = @transform_0, window_bounds = array<i64: 16, 32>}, {pipeline_mode = #tpu.pipeline_mode<synchronous>, transform_indices = @transform_1, window_bounds = array<i64: 2, 128, 32>}, {pipeline_mode = #tpu.pipeline_mode<synchronous>, transform_indices = @transform_2, window_bounds = array<i64: 2, 1, 32>}, {pipeline_mode = #tpu.pipeline_mode<synchronous>, transform_indices = @transform_3, window_bounds = array<i64: 2, 32, 32>}, {pipeline_mode = #tpu.pipeline_mode<synchronous>, transform_indices = @transform_4, window_bounds = array<i64: 2, 1, 32>}, {pipeline_mode = #tpu.pipeline_mode<synchronous>, transform_indices = @transform_5, window_bounds = array<i64: 2, 32, 256>}, {pipeline_mode = #tpu.pipeline_mode<synchronous>, transform_indices = @transform_6, window_bounds = array<i64: 2, 1, 256>}, {transform_indices = @transform_7, window_bounds = array<i64: 16, 128>}]} {
    %c0 = arith.constant 0 : index
    %c0_0 = arith.constant 0 : index
    %0 = vector.load %arg1[%c0, %c0_0] : memref<16x32xf32, #tpu.memory_space<vmem>>, vector<16x32xf32>
    %cst = arith.constant 0.000000e+00 : f32
    %1 = vector.broadcast %cst : f32 to vector<16x96xf32>
    %2 = tpu.concatenate %0, %1 in 1 : vector<16x32xf32>, vector<16x96xf32> -> vector<16x128xf32>
    %cst_1 = arith.constant 0.000000e+00 : f32
    %3 = vector.broadcast %cst_1 : f32 to vector<16x128xf32>
    %4 = arith.truncf %2 : vector<16x128xf32> to vector<16x128xbf16>
    %c0_2 = arith.constant 0 : index
    %c0_3 = arith.constant 0 : index
    %c0_4 = arith.constant 0 : index
    %5 = vector.load %arg2[%c0_2, %c0_3, %c0_4] : memref<2x128x32xbf16, #tpu.memory_space<vmem>>, vector<1x128x32xbf16>
    %6 = vector.shape_cast %5 : vector<1x128x32xbf16> to vector<128x32xbf16>
    %cst_5 = arith.constant dense<0.000000e+00> : vector<16x32xf32>
    %7 = tpu.matmul %4, %6, %cst_5 {dimension_numbers = #tpu.dot_dimension_numbers<[1], [0], [0], [1], [0, 0, 1, 1], [], []>} : vector<16x128xbf16>, vector<128x32xbf16>, vector<16x32xf32> -> vector<16x32xf32>
    %c0_6 = arith.constant 0 : index
    %c0_7 = arith.constant 0 : index
    %c0_8 = arith.constant 0 : index
    %8 = vector.load %arg3[%c0_6, %c0_7, %c0_8] : memref<2x1x32xf32, #tpu.memory_space<vmem>>, vector<1x1x32xf32>
    %9 = vector.shape_cast %8 : vector<1x1x32xf32> to vector<1x32xf32>
    %10 = vector.broadcast %9 : vector<1x32xf32> to vector<16x32xf32>
    %11 = arith.addf %7, %10 : vector<16x32xf32>
    %cst_9 = arith.constant 0.000000e+00 : f32
    %12 = vector.broadcast %cst_9 : f32 to vector<16x32xf32>
    %13 = arith.maximumf %11, %12 : vector<16x32xf32>
    %14 = arith.truncf %13 : vector<16x32xf32> to vector<16x32xbf16>
    %c0_10 = arith.constant 0 : index
    %c0_11 = arith.constant 0 : index
    %c0_12 = arith.constant 0 : index
    %15 = vector.load %arg4[%c0_10, %c0_11, %c0_12] : memref<2x32x32xbf16, #tpu.memory_space<vmem>>, vector<1x32x32xbf16>
    %16 = vector.shape_cast %15 : vector<1x32x32xbf16> to vector<32x32xbf16>
    %cst_13 = arith.constant dense<0.000000e+00> : vector<16x32xf32>
    %17 = tpu.matmul %14, %16, %cst_13 {dimension_numbers = #tpu.dot_dimension_numbers<[1], [0], [0], [1], [0, 0, 1, 1], [], []>} : vector<16x32xbf16>, vector<32x32xbf16>, vector<16x32xf32> -> vector<16x32xf32>
    %c0_14 = arith.constant 0 : index
    %c0_15 = arith.constant 0 : index
    %c0_16 = arith.constant 0 : index
    %18 = vector.load %arg5[%c0_14, %c0_15, %c0_16] : memref<2x1x32xf32, #tpu.memory_space<vmem>>, vector<1x1x32xf32>
    %19 = vector.shape_cast %18 : vector<1x1x32xf32> to vector<1x32xf32>
    %20 = vector.broadcast %19 : vector<1x32xf32> to vector<16x32xf32>
    %21 = arith.addf %17, %20 : vector<16x32xf32>
    %cst_17 = arith.constant 0.000000e+00 : f32
    %22 = vector.broadcast %cst_17 : f32 to vector<16x32xf32>
    %23 = arith.maximumf %21, %22 : vector<16x32xf32>
    %24 = arith.truncf %23 : vector<16x32xf32> to vector<16x32xbf16>
    %c0_18 = arith.constant 0 : index
    %c0_19 = arith.constant 0 : index
    %c0_20 = arith.constant 0 : index
    %25 = vector.load %arg6[%c0_18, %c0_19, %c0_20] : memref<2x32x256xbf16, #tpu.memory_space<vmem>>, vector<1x32x256xbf16>
    %26 = vector.shape_cast %25 : vector<1x32x256xbf16> to vector<32x256xbf16>
    %cst_21 = arith.constant dense<0.000000e+00> : vector<16x256xf32>
    %27 = tpu.matmul %24, %26, %cst_21 {dimension_numbers = #tpu.dot_dimension_numbers<[1], [0], [0], [1], [0, 0, 1, 1], [], []>} : vector<16x32xbf16>, vector<32x256xbf16>, vector<16x256xf32> -> vector<16x256xf32>
    %c0_22 = arith.constant 0 : index
    %c0_23 = arith.constant 0 : index
    %c0_24 = arith.constant 0 : index
    %28 = vector.load %arg7[%c0_22, %c0_23, %c0_24] : memref<2x1x256xf32, #tpu.memory_space<vmem>>, vector<1x1x256xf32>
    %29 = vector.shape_cast %28 : vector<1x1x256xf32> to vector<1x256xf32>
    %30 = vector.broadcast %29 : vector<1x256xf32> to vector<16x256xf32>
    %31 = arith.addf %27, %30 : vector<16x256xf32>
    %32 = vector.extract_strided_slice %31 {offsets = [0, 0], sizes = [16, 128], strides = [1, 1]} : vector<16x256xf32> to vector<16x128xf32>
    %33 = arith.subf %2, %32 : vector<16x128xf32>
    %34 = vector.extract_strided_slice %31 {offsets = [0, 128], sizes = [16, 128], strides = [1, 1]} : vector<16x256xf32> to vector<16x128xf32>
    %35 = arith.addf %3, %34 : vector<16x128xf32>
    %36 = arith.truncf %33 : vector<16x128xf32> to vector<16x128xbf16>
    %c1 = arith.constant 1 : index
    %c0_25 = arith.constant 0 : index
    %c0_26 = arith.constant 0 : index
    %37 = vector.load %arg2[%c1, %c0_25, %c0_26] : memref<2x128x32xbf16, #tpu.memory_space<vmem>>, vector<1x128x32xbf16>
    %38 = vector.shape_cast %37 : vector<1x128x32xbf16> to vector<128x32xbf16>
    %cst_27 = arith.constant dense<0.000000e+00> : vector<16x32xf32>
    %39 = tpu.matmul %36, %38, %cst_27 {dimension_numbers = #tpu.dot_dimension_numbers<[1], [0], [0], [1], [0, 0, 1, 1], [], []>} : vector<16x128xbf16>, vector<128x32xbf16>, vector<16x32xf32> -> vector<16x32xf32>
    %c1_28 = arith.constant 1 : index
    %c0_29 = arith.constant 0 : index
    %c0_30 = arith.constant 0 : index
    %40 = vector.load %arg3[%c1_28, %c0_29, %c0_30] : memref<2x1x32xf32, #tpu.memory_space<vmem>>, vector<1x1x32xf32>
    %41 = vector.shape_cast %40 : vector<1x1x32xf32> to vector<1x32xf32>
    %42 = vector.broadcast %41 : vector<1x32xf32> to vector<16x32xf32>
    %43 = arith.addf %39, %42 : vector<16x32xf32>
    %cst_31 = arith.constant 0.000000e+00 : f32
    %44 = vector.broadcast %cst_31 : f32 to vector<16x32xf32>
    %45 = arith.maximumf %43, %44 : vector<16x32xf32>
    %46 = arith.truncf %45 : vector<16x32xf32> to vector<16x32xbf16>
    %c1_32 = arith.constant 1 : index
    %c0_33 = arith.constant 0 : index
    %c0_34 = arith.constant 0 : index
    %47 = vector.load %arg4[%c1_32, %c0_33, %c0_34] : memref<2x32x32xbf16, #tpu.memory_space<vmem>>, vector<1x32x32xbf16>
    %48 = vector.shape_cast %47 : vector<1x32x32xbf16> to vector<32x32xbf16>
    %cst_35 = arith.constant dense<0.000000e+00> : vector<16x32xf32>
    %49 = tpu.matmul %46, %48, %cst_35 {dimension_numbers = #tpu.dot_dimension_numbers<[1], [0], [0], [1], [0, 0, 1, 1], [], []>} : vector<16x32xbf16>, vector<32x32xbf16>, vector<16x32xf32> -> vector<16x32xf32>
    %c1_36 = arith.constant 1 : index
    %c0_37 = arith.constant 0 : index
    %c0_38 = arith.constant 0 : index
    %50 = vector.load %arg5[%c1_36, %c0_37, %c0_38] : memref<2x1x32xf32, #tpu.memory_space<vmem>>, vector<1x1x32xf32>
    %51 = vector.shape_cast %50 : vector<1x1x32xf32> to vector<1x32xf32>
    %52 = vector.broadcast %51 : vector<1x32xf32> to vector<16x32xf32>
    %53 = arith.addf %49, %52 : vector<16x32xf32>
    %cst_39 = arith.constant 0.000000e+00 : f32
    %54 = vector.broadcast %cst_39 : f32 to vector<16x32xf32>
    %55 = arith.maximumf %53, %54 : vector<16x32xf32>
    %56 = arith.truncf %55 : vector<16x32xf32> to vector<16x32xbf16>
    %c1_40 = arith.constant 1 : index
    %c0_41 = arith.constant 0 : index
    %c0_42 = arith.constant 0 : index
    %57 = vector.load %arg6[%c1_40, %c0_41, %c0_42] : memref<2x32x256xbf16, #tpu.memory_space<vmem>>, vector<1x32x256xbf16>
    %58 = vector.shape_cast %57 : vector<1x32x256xbf16> to vector<32x256xbf16>
    %cst_43 = arith.constant dense<0.000000e+00> : vector<16x256xf32>
    %59 = tpu.matmul %56, %58, %cst_43 {dimension_numbers = #tpu.dot_dimension_numbers<[1], [0], [0], [1], [0, 0, 1, 1], [], []>} : vector<16x32xbf16>, vector<32x256xbf16>, vector<16x256xf32> -> vector<16x256xf32>
    %c1_44 = arith.constant 1 : index
    %c0_45 = arith.constant 0 : index
    %c0_46 = arith.constant 0 : index
    %60 = vector.load %arg7[%c1_44, %c0_45, %c0_46] : memref<2x1x256xf32, #tpu.memory_space<vmem>>, vector<1x1x256xf32>
    %61 = vector.shape_cast %60 : vector<1x1x256xf32> to vector<1x256xf32>
    %62 = vector.broadcast %61 : vector<1x256xf32> to vector<16x256xf32>
    %63 = arith.addf %59, %62 : vector<16x256xf32>
    %64 = vector.extract_strided_slice %63 {offsets = [0, 128], sizes = [16, 128], strides = [1, 1]} : vector<16x256xf32> to vector<16x128xf32>
    %65 = arith.addf %35, %64 : vector<16x128xf32>
    %66 = arith.truncf %65 : vector<16x128xf32> to vector<16x128xbf16>
    %c0_47 = arith.constant 0 : index
    %c0_48 = arith.constant 0 : index
    %67 = vector.load %arg8[%c0_47, %c0_48] : memref<16x128xbf16, #tpu.memory_space<vmem>>, vector<16x128xbf16>
    tpu.vector_store %arg8[%c0_47, %c0_48], %66 {strides = array<i32>} : memref<16x128xbf16, #tpu.memory_space<vmem>>, vector<16x128xbf16>,
    return
  }
  func.func @transform_0(%arg0: i32) -> (i32, i32) {
    %c0_i32 = arith.constant 0 : i32
    %c0_i32_0 = arith.constant 0 : i32
    return %arg0, %c0_i32 : i32, i32
  }
  func.func @transform_1(%arg0: i32) -> (i32, i32, i32) {
    %c0_i32 = arith.constant 0 : i32
    %c0_i32_0 = arith.constant 0 : i32
    %c0_i32_1 = arith.constant 0 : i32
    %c0_i32_2 = arith.constant 0 : i32
    return %c0_i32, %c0_i32_0, %c0_i32_1 : i32, i32, i32
  }
  func.func @transform_2(%arg0: i32) -> (i32, i32, i32) {
    %c0_i32 = arith.constant 0 : i32
    %c0_i32_0 = arith.constant 0 : i32
    %c0_i32_1 = arith.constant 0 : i32
    %c0_i32_2 = arith.constant 0 : i32
    return %c0_i32, %c0_i32_0, %c0_i32_1 : i32, i32, i32
  }
  func.func @transform_3(%arg0: i32) -> (i32, i32, i32) {
    %c0_i32 = arith.constant 0 : i32
    %c0_i32_0 = arith.constant 0 : i32
    %c0_i32_1 = arith.constant 0 : i32
    %c0_i32_2 = arith.constant 0 : i32
    return %c0_i32, %c0_i32_0, %c0_i32_1 : i32, i32, i32
  }
  func.func @transform_4(%arg0: i32) -> (i32, i32, i32) {
    %c0_i32 = arith.constant 0 : i32
    %c0_i32_0 = arith.constant 0 : i32
    %c0_i32_1 = arith.constant 0 : i32
    %c0_i32_2 = arith.constant 0 : i32
    return %c0_i32, %c0_i32_0, %c0_i32_1 : i32, i32, i32
  }
  func.func @transform_5(%arg0: i32) -> (i32, i32, i32) {
    %c0_i32 = arith.constant 0 : i32
    %c0_i32_0 = arith.constant 0 : i32
    %c0_i32_1 = arith.constant 0 : i32
    %c0_i32_2 = arith.constant 0 : i32
    return %c0_i32, %c0_i32_0, %c0_i32_1 : i32, i32, i32
  }
  func.func @transform_6(%arg0: i32) -> (i32, i32, i32) {
    %c0_i32 = arith.constant 0 : i32
    %c0_i32_0 = arith.constant 0 : i32
    %c0_i32_1 = arith.constant 0 : i32
    %c0_i32_2 = arith.constant 0 : i32
    return %c0_i32, %c0_i32_0, %c0_i32_1 : i32, i32, i32
  }
  func.func @transform_7(%arg0: i32) -> (i32, i32) {
    %c0_i32 = arith.constant 0 : i32
    %c0_i32_0 = arith.constant 0 : i32
    return %arg0, %c0_i32 : i32, i32
  }
}

</mosaic_0001>

<llo_original>
// kernel: tpu_custom_call.1
$region0: #{tpu_custom_call.1}
  #allocation0 [shape = 'u32[]', space=smem, size = 0x4, offset = 0x4, fixed_abs, tag = 'smem constant byte address 0x4 - core index']
  #allocation1 [shape = 'u32[144,128]{1,0:T(1,128)}', space=vmem, size = 0x12000, scoped, tag = 'internal scratch']
  %s0 = inlined_call_operand.vmem [shape: f32[16,32], index: 0, kind: input, shape index: {}]
  %s1 = inlined_call_operand.vmem [shape: bf16[2,128,32], index: 1, kind: input, shape index: {}]
  %s2 = inlined_call_operand.vmem [shape: f32[2,1,32], index: 2, kind: input, shape index: {}]
  %s3 = inlined_call_operand.vmem [shape: bf16[2,32,32], index: 3, kind: input, shape index: {}]
  %s4 = inlined_call_operand.vmem [shape: f32[2,1,32], index: 4, kind: input, shape index: {}]
  %s5 = inlined_call_operand.vmem [shape: bf16[2,32,256], index: 5, kind: input, shape index: {}]
  %s6 = inlined_call_operand.vmem [shape: f32[2,1,256], index: 6, kind: input, shape index: {}]
  %s7 = inlined_call_operand.hbm [shape: bf16[16,128], index: 7, kind: output, shape index: {}]
  %s8 = sld [smem:[#allocation0]]
  $region38: #{tpu_custom_call.1} parent=0
    _
  %s10 = ssub.s32 1, %s8
  %s11 = scalar_select 0, %s10, %s8
  $region1: #{tpu_custom_call.1} parent=0
    #allocation2 [shape = 'u8[4096]{0}', space=vmem, size = 0x1000, scoped, tag = 'output window, operand 0, single buffered']
    #allocation3 [shape = 's32[1]{0}', space=sflag, size = 0x4, scoped, tag = 'scoped memory for tpu_custom_call.1']
    %12 = vsyncpa [#allocation3], 0
    // Predicated region
    $region2: #{tpu_custom_call.1} parent=1 // pred_check
      _
    $region3: #{tpu_custom_call.1} parent=1 // pred_check_branch
      %14 = sbr.rel (0) target = $region5
    $region4: #{tpu_custom_call.1} parent=1 // pred_region
      _
    $region5: #{tpu_custom_call.1} parent=1 // pred_fallthru
      _
    // Predicated region
    $region6: #{tpu_custom_call.1} parent=1 // pred_check
      _
    $region7: #{tpu_custom_call.1} parent=1 // pred_check_branch
      %16 = sbr.rel (0) target = $region9
    $region8: #{tpu_custom_call.1} parent=1 // pred_region
      _
    $region9: #{tpu_custom_call.1} parent=1 // pred_fallthru
      _
    // Predicated region
    $region10: #{tpu_custom_call.1} parent=1 // pred_check
      _
    $region11: #{tpu_custom_call.1} parent=1 // pred_check_branch
      %18 = sbr.rel (0) target = $region13
    $region12: #{tpu_custom_call.1} parent=1 // pred_region
      _
    $region13: #{tpu_custom_call.1} parent=1 // pred_fallthru
      _
    // Predicated region
    $region14: #{tpu_custom_call.1} parent=1 // pred_check
      _
    $region15: #{tpu_custom_call.1} parent=1 // pred_check_branch
      %20 = sbr.rel (0) target = $region17
    $region16: #{tpu_custom_call.1} parent=1 // pred_region
      _
    $region17: #{tpu_custom_call.1} parent=1 // pred_fallthru
      _
    // Predicated region
    $region18: #{tpu_custom_call.1} parent=1 // pred_check
      _
    $region19: #{tpu_custom_call.1} parent=1 // pred_check_branch
      %22 = sbr.rel (0) target = $region21
    $region20: #{tpu_custom_call.1} parent=1 // pred_region
      _
    $region21: #{tpu_custom_call.1} parent=1 // pred_fallthru
      _
    // Predicated region
    $region22: #{tpu_custom_call.1} parent=1 // pred_check
      _
    $region23: #{tpu_custom_call.1} parent=1 // pred_check_branch
      %24 = sbr.rel (0) target = $region25
    $region24: #{tpu_custom_call.1} parent=1 // pred_region
      _
    $region25: #{tpu_custom_call.1} parent=1 // pred_fallthru
      _
    // Predicated region
    $region26: #{tpu_custom_call.1} parent=1 // pred_check
      _
    $region27: #{tpu_custom_call.1} parent=1 // pred_check_branch
      %26 = sbr.rel (0) target = $region29
    $region28: #{tpu_custom_call.1} parent=1 // pred_region
      _
    $region29: #{tpu_custom_call.1} parent=1 // pred_fallthru
      _
    %v28 = vld [vmem:[%s0] sm:$0xff]
    %v29 = vld [vmem:[%s0 + $0x8] sm:$0xff]
    %vm30 = vcmask 261120
    %v31 = vsel %vm30, %v28, 0.0
    %v32 = vsel %vm30, %v29, 0.0
    %v33 = vpack.c.bf16 %v32, %v31
    %v34 = vld [vmem:[%s1] sm:$0xf]
    %v35 = vld [vmem:[%s1 + $0x4] sm:$0xf]
    %v36 = vld [vmem:[%s1 + $0x8] sm:$0xf]
    %v37 = vld [vmem:[%s1 + $0xc] sm:$0xf]
    %v38 = vld [vmem:[%s1 + $0x10] sm:$0xf]
    %v39 = vld [vmem:[%s1 + $0x14] sm:$0xf]
    %v40 = vld [vmem:[%s1 + $0x18] sm:$0xf]
    %v41 = vld [vmem:[%s1 + $0x1c] sm:$0xf]
    %v42 = vld [vmem:[%s1 + $0x20] sm:$0xf]
    %v43 = vld [vmem:[%s1 + $0x24] sm:$0xf]
    %v44 = vld [vmem:[%s1 + $0x28] sm:$0xf]
    %v45 = vld [vmem:[%s1 + $0x2c] sm:$0xf]
    %v46 = vld [vmem:[%s1 + $0x30] sm:$0xf]
    %v47 = vld [vmem:[%s1 + $0x34] sm:$0xf]
    %v48 = vld [vmem:[%s1 + $0x38] sm:$0xf]
    %v49 = vld [vmem:[%s1 + $0x3c] sm:$0xf]
    %v50 = vld [vmem:[%s2] sm:$0x1]
    %v52 = vlaneseq
    %v53 = vshrl.u32 %v52, 7
    %v54 = vsub.s32 0, %v53
    %v55 = vrot.slane %v50, %v54
    %v73 = vunpack.c.l.b16 %v34
    %v74 = vunpack.c.l.b16 %v35
    %v75 = vunpack.c.l.b16 %v36
    %v76 = vunpack.c.l.b16 %v37
    %v77 = vunpack.c.l.b16 %v38
    %v78 = vunpack.c.l.b16 %v39
    %v79 = vunpack.c.l.b16 %v40
    %v80 = vunpack.c.l.b16 %v41
    %v81 = vunpack.c.l.b16 %v42
    %v82 = vunpack.c.l.b16 %v43
    %v83 = vunpack.c.l.b16 %v44
    %v84 = vunpack.c.l.b16 %v45
    %v85 = vunpack.c.l.b16 %v46
    %v86 = vunpack.c.l.b16 %v47
    %v87 = vunpack.c.l.b16 %v48
    %v88 = vunpack.c.l.b16 %v49
    %v89 = vpack.c.b16 %v74, %v73
    %v90 = vpack.c.b16 %v76, %v75
    %v91 = vpack.c.b16 %v78, %v77
    %v92 = vpack.c.b16 %v80, %v79
    %v93 = vpack.c.b16 %v82, %v81
    %v94 = vpack.c.b16 %v84, %v83
    %v95 = vpack.c.b16 %v86, %v85
    %v96 = vpack.c.b16 %v88, %v87
    %105 = vmatprep.subr.bf16.mxu0 0
    %106 = vmatpush1.bf16.msra.mxu0 %v96
    %107 = vmatprep.subr.bf16.mxu0 0
    %108 = vmatpush1.bf16.msra.mxu0 %v95
    %109 = vmatprep.subr.bf16.mxu0 0
    %110 = vmatpush1.bf16.msra.mxu0 %v94
    %111 = vmatprep.subr.bf16.mxu0 0
    %112 = vmatpush1.bf16.msra.mxu0 %v93
    %113 = vmatprep.subr.bf16.mxu0 0
    %114 = vmatpush1.bf16.msra.mxu0 %v92
    %115 = vmatprep.subr.bf16.mxu0 0
    %116 = vmatpush1.bf16.msra.mxu0 %v91
    %117 = vmatprep.subr.bf16.mxu0 0
    %118 = vmatpush1.bf16.msra.mxu0 %v90
    %119 = vmatprep.subr.bf16.mxu0 0
    %120 = vmatpush1.bf16.msra.mxu0 %v89
    %121 = vmatprep.subr.bf16.mxu0 0
    %122 = vmatpush2.bf16.msra.mxu0 0
    %123 = vmatprep.subr.bf16.mxu0 0
    %124 = vmatpush2.bf16.msra.mxu0 0
    %125 = vmatprep.subr.bf16.mxu0 0
    %126 = vmatpush2.bf16.msra.mxu0 0
    %127 = vmatprep.subr.bf16.mxu0 0
    %128 = vmatpush2.bf16.msra.mxu0 0
    %129 = vmatprep.subr.bf16.mxu0 0
    %130 = vmatpush2.bf16.msra.mxu0 0
    %131 = vmatprep.subr.bf16.mxu0 0
    %132 = vmatpush2.bf16.msra.mxu0 0
    %133 = vmatprep.subr.bf16.mxu0 0
    %134 = vmatpush2.bf16.msra.mxu0 0
    %135 = vmatprep.subr.bf16.mxu0 0
    %136 = vmatpush2.bf16.msra.mxu0 0
    %137 = vmatprep.mubr.bf16.mxu0 0
    %138 = vmatmul.mubr.bf16.gmra.mxu0 %v33
    %v139 = vpop.f32.mrf.mxu0
    %v140 = vadd.f32 %v55, %v139
    %v141 = vpop.f32.mrf.mxu0
    %v142 = vpop.f32.mrf.mxu0
    %v143 = vadd.f32 %v55, %v142
    %v144 = vpop.f32.mrf.mxu0
    %145 = vdwg.mxu0
    %v146 = vmax.f32 %v140, 0.0
    %v147 = vmax.f32 %v143, 0.0
    %v148 = vpack.c.bf16 %v147, %v146
    %v149 = vld [vmem:[%s3] sm:$0xf]
    %v150 = vld [vmem:[%s3 + $0x4] sm:$0xf]
    %v151 = vld [vmem:[%s3 + $0x8] sm:$0xf]
    %v152 = vld [vmem:[%s3 + $0xc] sm:$0xf]
    %v153 = vld [vmem:[%s4] sm:$0x1]
    %v155 = vlaneseq
    %v156 = vshrl.u32 %v155, 7
    %v157 = vsub.s32 0, %v156
    %v158 = vrot.slane %v153, %v157
    %v164 = vunpack.c.l.b16 %v149
    %v165 = vunpack.c.l.b16 %v150
    %v166 = vunpack.c.l.b16 %v151
    %v167 = vunpack.c.l.b16 %v152
    %v168 = vpack.c.b16 %v165, %v164
    %v169 = vpack.c.b16 %v167, %v166
    %v173 = vsel %vm30, %v148, 0
    %175 = vmatprep.subr.bf16.mxu0 0
    %176 = vmatpush1.bf16.msra.mxu0 0
    %177 = vmatprep.subr.bf16.mxu0 0
    %178 = vmatpush1.bf16.msra.mxu0 0
    %179 = vmatprep.subr.bf16.mxu0 0
    %180 = vmatpush1.bf16.msra.mxu0 0
    %181 = vmatprep.subr.bf16.mxu0 0
    %182 = vmatpush1.bf16.msra.mxu0 0
    %183 = vmatprep.subr.bf16.mxu0 0
    %184 = vmatpush1.bf16.msra.mxu0 0
    %185 = vmatprep.subr.bf16.mxu0 0
    %186 = vmatpush1.bf16.msra.mxu0 0
    %187 = vmatprep.subr.bf16.mxu0 0
    %188 = vmatpush1.bf16.msra.mxu0 %v169
    %189 = vmatprep.subr.bf16.mxu0 0
    %190 = vmatpush1.bf16.msra.mxu0 %v168
    %191 = vmatprep.subr.bf16.mxu0 0
    %192 = vmatpush2.bf16.msra.mxu0 0
    %193 = vmatprep.subr.bf16.mxu0 0
    %194 = vmatpush2.bf16.msra.mxu0 0
    %195 = vmatprep.subr.bf16.mxu0 0
    %196 = vmatpush2.bf16.msra.mxu0 0
    %197 = vmatprep.subr.bf16.mxu0 0
    %198 = vmatpush2.bf16.msra.mxu0 0
    %199 = vmatprep.subr.bf16.mxu0 0
    %200 = vmatpush2.bf16.msra.mxu0 0
    %201 = vmatprep.subr.bf16.mxu0 0
    %202 = vmatpush2.bf16.msra.mxu0 0
    %203 = vmatprep.subr.bf16.mxu0 0
    %204 = vmatpush2.bf16.msra.mxu0 0
    %205 = vmatprep.subr.bf16.mxu0 0
    %206 = vmatpush2.bf16.msra.mxu0 0
    %207 = vmatprep.mubr.bf16.mxu0 0
    %208 = vmatmul.mubr.bf16.gmra.mxu0 %v173
    %v209 = vpop.f32.mrf.mxu0
    %v210 = vadd.f32 %v158, %v209
    %v211 = vpop.f32.mrf.mxu0
    %v212 = vpop.f32.mrf.mxu0
    %v213 = vadd.f32 %v158, %v212
    %v214 = vpop.f32.mrf.mxu0
    %215 = vdwg.mxu0
    %v216 = vmax.f32 %v210, 0.0
    %v217 = vmax.f32 %v213, 0.0
    %v218 = vpack.c.bf16 %v217, %v216
    %v219 = vld [vmem:[%s5] sm:$0xff]
    %v220 = vld [vmem:[%s5 + $0x8] sm:$0xff]
    %v221 = vld [vmem:[%s5 + $0x10] sm:$0xff]
    %v222 = vld [vmem:[%s5 + $0x18] sm:$0xff]
    %v223 = vld [vmem:[%s6] sm:$0x3]
    %v225 = vlaneseq
    %v226 = vshrl.u32 %v225, 7
    %v227 = vsub.s32 0, %v226
    %v228 = vrot.slane %v223, %v227
    %v229 = vlaneseq
    %v230 = vshrl.u32 %v229, 7
    %v231 = vsub.s32 1, %v230
    %v232 = vrot.slane %v223, %v231
    %v239 = vunpack.c.l.b16 %v219
    %v240 = vunpack.c.h.b16 %v219
    %v241 = vunpack.c.l.b16 %v220
    %v242 = vunpack.c.h.b16 %v220
    %v243 = vunpack.c.l.b16 %v221
    %v244 = vunpack.c.h.b16 %v221
    %v245 = vunpack.c.l.b16 %v222
    %v246 = vunpack.c.h.b16 %v222
    %v247 = vpack.c.b16 %v241, %v239
    %v248 = vpack.c.b16 %v242, %v240
    %v249 = vpack.c.b16 %v245, %v243
    %v250 = vpack.c.b16 %v246, %v244
    %v256 = vsel %vm30, %v218, 0
    %258 = vmatprep.subr.bf16.mxu0 0
    %259 = vmatpush1.bf16.msra.mxu0 0
    %260 = vmatprep.subr.bf16.mxu0 0
    %261 = vmatpush1.bf16.msra.mxu0 0
    %262 = vmatprep.subr.bf16.mxu0 0
    %263 = vmatpush1.bf16.msra.mxu0 0
    %264 = vmatprep.subr.bf16.mxu0 0
    %265 = vmatpush1.bf16.msra.mxu0 0
    %266 = vmatprep.subr.bf16.mxu0 0
    %267 = vmatpush1.bf16.msra.mxu0 0
    %268 = vmatprep.subr.bf16.mxu0 0
    %269 = vmatpush1.bf16.msra.mxu0 0
    %270 = vmatprep.subr.bf16.mxu0 %v250
    %271 = vmatpush1.bf16.msra.mxu0 %v249
    %272 = vmatprep.subr.bf16.mxu0 %v248
    %273 = vmatpush1.bf16.msra.mxu0 %v247
    %274 = vmatprep.subr.bf16.mxu0 0
    %275 = vmatpush2.bf16.msra.mxu0 0
    %276 = vmatprep.subr.bf16.mxu0 0
    %277 = vmatpush2.bf16.msra.mxu0 0
    %278 = vmatprep.subr.bf16.mxu0 0
    %279 = vmatpush2.bf16.msra.mxu0 0
    %280 = vmatprep.subr.bf16.mxu0 0
    %281 = vmatpush2.bf16.msra.mxu0 0
    %282 = vmatprep.subr.bf16.mxu0 0
    %283 = vmatpush2.bf16.msra.mxu0 0
    %284 = vmatprep.subr.bf16.mxu0 0
    %285 = vmatpush2.bf16.msra.mxu0 0
    %286 = vmatprep.subr.bf16.mxu0 0
    %287 = vmatpush2.bf16.msra.mxu0 0
    %288 = vmatprep.subr.bf16.mxu0 0
    %289 = vmatpush2.bf16.msra.mxu0 0
    %290 = vmatprep.mubr.bf16.mxu0 0
    %291 = vmatmul.mubr.bf16.gmra.mxu0 %v256
    %v292 = vpop.f32.mrf.mxu0
    %v293 = vadd.f32 %v228, %v292
    %v294 = vpop.f32.mrf.mxu0
    %v295 = vadd.f32 %v232, %v294
    %v296 = vpop.f32.mrf.mxu0
    %v297 = vadd.f32 %v228, %v296
    %v298 = vpop.f32.mrf.mxu0
    %v299 = vadd.f32 %v232, %v298
    %300 = vdwg.mxu0
    %v301 = vsub.f32 %v31, %v293
    %v302 = vsub.f32 %v32, %v297
    %v303 = vadd.f32 %v295, 0.0
    %v304 = vadd.f32 %v299, 0.0
    %v305 = vpack.c.bf16 %v302, %v301
    %s306 = scalar_lea.vmem %s1, 64
    %v307 = vld [vmem:[%s306] sm:$0xf]
    %v308 = vld [vmem:[%s306 + $0x4] sm:$0xf]
    %v309 = vld [vmem:[%s306 + $0x8] sm:$0xf]
    %v310 = vld [vmem:[%s306 + $0xc] sm:$0xf]
    %v311 = vld [vmem:[%s306 + $0x10] sm:$0xf]
    %v312 = vld [vmem:[%s306 + $0x14] sm:$0xf]
    %v313 = vld [vmem:[%s306 + $0x18] sm:$0xf]
    %v314 = vld [vmem:[%s306 + $0x1c] sm:$0xf]
    %v315 = vld [vmem:[%s306 + $0x20] sm:$0xf]
    %v316 = vld [vmem:[%s306 + $0x24] sm:$0xf]
    %v317 = vld [vmem:[%s306 + $0x28] sm:$0xf]
    %v318 = vld [vmem:[%s306 + $0x2c] sm:$0xf]
    %v319 = vld [vmem:[%s306 + $0x30] sm:$0xf]
    %v320 = vld [vmem:[%s306 + $0x34] sm:$0xf]
    %v321 = vld [vmem:[%s306 + $0x38] sm:$0xf]
    %v322 = vld [vmem:[%s306 + $0x3c] sm:$0xf]
    %s323 = scalar_lea.vmem %s2, 1
    %v324 = vld [vmem:[%s323] sm:$0x1]
    %v326 = vlaneseq
    %v327 = vshrl.u32 %v326, 7
    %v328 = vsub.s32 0, %v327
    %v329 = vrot.slane %v324, %v328
    %v347 = vunpack.c.l.b16 %v307
    %v348 = vunpack.c.l.b16 %v308
    %v349 = vunpack.c.l.b16 %v309
    %v350 = vunpack.c.l.b16 %v310
    %v351 = vunpack.c.l.b16 %v311
    %v352 = vunpack.c.l.b16 %v312
    %v353 = vunpack.c.l.b16 %v313
    %v354 = vunpack.c.l.b16 %v314
    %v355 = vunpack.c.l.b16 %v315
    %v356 = vunpack.c.l.b16 %v316
    %v357 = vunpack.c.l.b16 %v317
    %v358 = vunpack.c.l.b16 %v318
    %v359 = vunpack.c.l.b16 %v319
    %v360 = vunpack.c.l.b16 %v320
    %v361 = vunpack.c.l.b16 %v321
    %v362 = vunpack.c.l.b16 %v322
    %v363 = vpack.c.b16 %v348, %v347
    %v364 = vpack.c.b16 %v350, %v349
    %v365 = vpack.c.b16 %v352, %v351
    %v366 = vpack.c.b16 %v354, %v353
    %v367 = vpack.c.b16 %v356, %v355
    %v368 = vpack.c.b16 %v358, %v357
    %v369 = vpack.c.b16 %v360, %v359
    %v370 = vpack.c.b16 %v362, %v361
    %379 = vmatprep.subr.bf16.mxu0 0
    %380 = vmatpush1.bf16.msra.mxu0 %v370
    %381 = vmatprep.subr.bf16.mxu0 0
    %382 = vmatpush1.bf16.msra.mxu0 %v369
    %383 = vmatprep.subr.bf16.mxu0 0
    %384 = vmatpush1.bf16.msra.mxu0 %v368
    %385 = vmatprep.subr.bf16.mxu0 0
    %386 = vmatpush1.bf16.msra.mxu0 %v367
    %387 = vmatprep.subr.bf16.mxu0 0
    %388 = vmatpush1.bf16.msra.mxu0 %v366
    %389 = vmatprep.subr.bf16.mxu0 0
    %390 = vmatpush1.bf16.msra.mxu0 %v365
    %391 = vmatprep.subr.bf16.mxu0 0
    %392 = vmatpush1.bf16.msra.mxu0 %v364
    %393 = vmatprep.subr.bf16.mxu0 0
    %394 = vmatpush1.bf16.msra.mxu0 %v363
    %395 = vmatprep.subr.bf16.mxu0 0
    %396 = vmatpush2.bf16.msra.mxu0 0
    %397 = vmatprep.subr.bf16.mxu0 0
    %398 = vmatpush2.bf16.msra.mxu0 0
    %399 = vmatprep.subr.bf16.mxu0 0
    %400 = vmatpush2.bf16.msra.mxu0 0
    %401 = vmatprep.subr.bf16.mxu0 0
    %402 = vmatpush2.bf16.msra.mxu0 0
    %403 = vmatprep.subr.bf16.mxu0 0
    %404 = vmatpush2.bf16.msra.mxu0 0
    %405 = vmatprep.subr.bf16.mxu0 0
    %406 = vmatpush2.bf16.msra.mxu0 0
    %407 = vmatprep.subr.bf16.mxu0 0
    %408 = vmatpush2.bf16.msra.mxu0 0
    %409 = vmatprep.subr.bf16.mxu0 0
    %410 = vmatpush2.bf16.msra.mxu0 0
    %411 = vmatprep.mubr.bf16.mxu0 0
    %412 = vmatmul.mubr.bf16.gmra.mxu0 %v305
    %v413 = vpop.f32.mrf.mxu0
    %v414 = vadd.f32 %v329, %v413
    %v415 = vpop.f32.mrf.mxu0
    %v416 = vpop.f32.mrf.mxu0
    %v417 = vadd.f32 %v329, %v416
    %v418 = vpop.f32.mrf.mxu0
    %419 = vdwg.mxu0
    %v420 = vmax.f32 %v414, 0.0
    %v421 = vmax.f32 %v417, 0.0
    %v422 = vpack.c.bf16 %v421, %v420
    %s423 = scalar_lea.vmem %s3, 16
    %v424 = vld [vmem:[%s423] sm:$0xf]
    %v425 = vld [vmem:[%s423 + $0x4] sm:$0xf]
    %v426 = vld [vmem:[%s423 + $0x8] sm:$0xf]
    %v427 = vld [vmem:[%s423 + $0xc] sm:$0xf]
    %s428 = scalar_lea.vmem %s4, 1
    %v429 = vld [vmem:[%s428] sm:$0x1]
    %v431 = vlaneseq
    %v432 = vshrl.u32 %v431, 7
    %v433 = vsub.s32 0, %v432
    %v434 = vrot.slane %v429, %v433
    %v440 = vunpack.c.l.b16 %v424
    %v441 = vunpack.c.l.b16 %v425
    %v442 = vunpack.c.l.b16 %v426
    %v443 = vunpack.c.l.b16 %v427
    %v444 = vpack.c.b16 %v441, %v440
    %v445 = vpack.c.b16 %v443, %v442
    %v449 = vsel %vm30, %v422, 0
    %451 = vmatprep.subr.bf16.mxu0 0
    %452 = vmatpush1.bf16.msra.mxu0 0
    %453 = vmatprep.subr.bf16.mxu0 0
    %454 = vmatpush1.bf16.msra.mxu0 0
    %455 = vmatprep.subr.bf16.mxu0 0
    %456 = vmatpush1.bf16.msra.mxu0 0
    %457 = vmatprep.subr.bf16.mxu0 0
    %458 = vmatpush1.bf16.msra.mxu0 0
    %459 = vmatprep.subr.bf16.mxu0 0
    %460 = vmatpush1.bf16.msra.mxu0 0
    %461 = vmatprep.subr.bf16.mxu0 0
    %462 = vmatpush1.bf16.msra.mxu0 0
    %463 = vmatprep.subr.bf16.mxu0 0
    %464 = vmatpush1.bf16.msra.mxu0 %v445
    %465 = vmatprep.subr.bf16.mxu0 0
    %466 = vmatpush1.bf16.msra.mxu0 %v444
    %467 = vmatprep.subr.bf16.mxu0 0
    %468 = vmatpush2.bf16.msra.mxu0 0
    %469 = vmatprep.subr.bf16.mxu0 0
    %470 = vmatpush2.bf16.msra.mxu0 0
    %471 = vmatprep.subr.bf16.mxu0 0
    %472 = vmatpush2.bf16.msra.mxu0 0
    %473 = vmatprep.subr.bf16.mxu0 0
    %474 = vmatpush2.bf16.msra.mxu0 0
    %475 = vmatprep.subr.bf16.mxu0 0
    %476 = vmatpush2.bf16.msra.mxu0 0
    %477 = vmatprep.subr.bf16.mxu0 0
    %478 = vmatpush2.bf16.msra.mxu0 0
    %479 = vmatprep.subr.bf16.mxu0 0
    %480 = vmatpush2.bf16.msra.mxu0 0
    %481 = vmatprep.subr.bf16.mxu0 0
    %482 = vmatpush2.bf16.msra.mxu0 0
    %483 = vmatprep.mubr.bf16.mxu0 0
    %484 = vmatmul.mubr.bf16.gmra.mxu0 %v449
    %v485 = vpop.f32.mrf.mxu0
    %v486 = vadd.f32 %v434, %v485
    %v487 = vpop.f32.mrf.mxu0
    %v488 = vpop.f32.mrf.mxu0
    %v489 = vadd.f32 %v434, %v488
    %v490 = vpop.f32.mrf.mxu0
    %491 = vdwg.mxu0
    %v492 = vmax.f32 %v486, 0.0
    %v493 = vmax.f32 %v489, 0.0
    %v494 = vpack.c.bf16 %v493, %v492
    %s495 = scalar_lea.vmem %s5, 32
    %v496 = vld [vmem:[%s495] sm:$0xff]
    %v497 = vld [vmem:[%s495 + $0x8] sm:$0xff]
    %v498 = vld [vmem:[%s495 + $0x10] sm:$0xff]
    %v499 = vld [vmem:[%s495 + $0x18] sm:$0xff]
    %s500 = scalar_lea.vmem %s6, 2
    %v501 = vld [vmem:[%s500] sm:$0x3]
    %v503 = vlaneseq
    %v504 = vshrl.u32 %v503, 7
    %v505 = vsub.s32 1, %v504
    %v506 = vrot.slane %v501, %v505
    %v512 = vunpack.c.l.b16 %v496
    %v513 = vunpack.c.h.b16 %v496
    %v514 = vunpack.c.l.b16 %v497
    %v515 = vunpack.c.h.b16 %v497
    %v516 = vunpack.c.l.b16 %v498
    %v517 = vunpack.c.h.b16 %v498
    %v518 = vunpack.c.l.b16 %v499
    %v519 = vunpack.c.h.b16 %v499
    %v520 = vpack.c.b16 %v514, %v512
    %v521 = vpack.c.b16 %v515, %v513
    %v522 = vpack.c.b16 %v518, %v516
    %v523 = vpack.c.b16 %v519, %v517
    %v529 = vsel %vm30, %v494, 0
    %531 = vmatprep.subr.bf16.mxu0 0
    %532 = vmatpush1.bf16.msra.mxu0 0
    %533 = vmatprep.subr.bf16.mxu0 0
    %534 = vmatpush1.bf16.msra.mxu0 0
    %535 = vmatprep.subr.bf16.mxu0 0
    %536 = vmatpush1.bf16.msra.mxu0 0
    %537 = vmatprep.subr.bf16.mxu0 0
    %538 = vmatpush1.bf16.msra.mxu0 0
    %539 = vmatprep.subr.bf16.mxu0 0
    %540 = vmatpush1.bf16.msra.mxu0 0
    %541 = vmatprep.subr.bf16.mxu0 0
    %542 = vmatpush1.bf16.msra.mxu0 0
    %543 = vmatprep.subr.bf16.mxu0 %v523
    %544 = vmatpush1.bf16.msra.mxu0 %v522
    %545 = vmatprep.subr.bf16.mxu0 %v521
    %546 = vmatpush1.bf16.msra.mxu0 %v520
    %547 = vmatprep.subr.bf16.mxu0 0
    %548 = vmatpush2.bf16.msra.mxu0 0
    %549 = vmatprep.subr.bf16.mxu0 0
    %550 = vmatpush2.bf16.msra.mxu0 0
    %551 = vmatprep.subr.bf16.mxu0 0
    %552 = vmatpush2.bf16.msra.mxu0 0
    %553 = vmatprep.subr.bf16.mxu0 0
    %554 = vmatpush2.bf16.msra.mxu0 0
    %555 = vmatprep.subr.bf16.mxu0 0
    %556 = vmatpush2.bf16.msra.mxu0 0
    %557 = vmatprep.subr.bf16.mxu0 0
    %558 = vmatpush2.bf16.msra.mxu0 0
    %559 = vmatprep.subr.bf16.mxu0 0
    %560 = vmatpush2.bf16.msra.mxu0 0
    %561 = vmatprep.subr.bf16.mxu0 0
    %562 = vmatpush2.bf16.msra.mxu0 0
    %563 = vmatprep.mubr.bf16.mxu0 0
    %564 = vmatmul.mubr.bf16.gmra.mxu0 %v529
    %v565 = vpop.f32.mrf.mxu0
    %v566 = vpop.f32.mrf.mxu0
    %v567 = vadd.f32 %v506, %v566
    %v568 = vpop.f32.mrf.mxu0
    %v569 = vpop.f32.mrf.mxu0
    %v570 = vadd.f32 %v506, %v569
    %571 = vdwg.mxu0
    %v572 = vadd.f32 %v303, %v567
    %v573 = vadd.f32 %v304, %v570
    %v574 = vpack.c.bf16 %v573, %v572
    %v576 = vunpack.c.l.b16 %v574
    %v577 = vunpack.c.h.b16 %v574
    %v578 = vpack.c.b16 %v576, %v576
    %v579 = vpack.c.b16 %v577, %v577
    %582 = vst [vmem:[#allocation2] sm:$0xf] %v578
    %583 = vst [vmem:[#allocation2 + $0x4] sm:$0xf] %v579
    // Predicated region
    $region30: #{tpu_custom_call.1} parent=1 // pred_check
      _
    $region31: #{tpu_custom_call.1} parent=1 // pred_check_branch
      %585 = sbr.rel (0) target = $region33
    $region32: #{tpu_custom_call.1} parent=1 // pred_region
      %s587 = ssub.s32 128, 128
      %588 = vsyncadd [#allocation3], %s587
      %s589 = sshll.u32 [#allocation2], 4
      %s590 = int_to_ptr.vmem [resolvable:$true] %s589
      %595 = dma.vmem_to_hbm [thread:$0]  %s590, 128, %s7, [#allocation3], 64, 64, 4
    $region33: #{tpu_custom_call.1} parent=1 // pred_fallthru
      _
    // Predicated region
    $region34: #{tpu_custom_call.1} parent=1 // pred_check
      _
    $region35: #{tpu_custom_call.1} parent=1 // pred_check_branch
      %597 = sbr.rel (0) target = $region37
    $region36: #{tpu_custom_call.1} parent=1 // pred_region
      %598 = dma.done [#allocation3], 128
    $region37: #{tpu_custom_call.1} parent=1 // pred_fallthru
      _
    %599 = vsyncpa [#allocation3], 1

</llo_original>
